<compile_context>
chip_gen: v6e
topology: v6e:2x2x1
jax: 0.10.0
libtpu: 0.0.40
codegen_flags: <defaults>
</compile_context>

<pallas_src>
import functools

import jax
import jax.numpy as jnp
from jax.experimental import pallas as pl
from jax.experimental.pallas import tpu as pltpu

_EPS = 1e-6  # matches torch.nn.functional.pairwise_distance default eps


def _contrastive_loss_kernel(o1_ref, o2_ref, label_ref, out_ref, acc_ref, *,
                             margin, batch, row_tile, tiles_per_slice,
                             mask_from_tile):
    c = pl.program_id(0)          # batch slice (maps to a TC on megacore parts)
    j = pl.program_id(1)          # streaming step within the slice
    t = c * tiles_per_slice + j   # global row-tile index

    @pl.when(j == 0)
    def _():
        acc_ref[...] = jnp.zeros_like(acc_ref)

    # Upcast in-kernel; inputs stream from HBM in their native dtype.
    o1 = o1_ref[...].astype(jnp.float32)          # (TB, D)
    o2 = o2_ref[...].astype(jnp.float32)          # (TB, D)
    label = label_ref[...].astype(jnp.float32)    # (TB, 1)

    # F.pairwise_distance: ||x1 - x2 + eps||_2 along the last dim, keepdim.
    diff = o1 - o2 + _EPS                                    # (TB, D)
    sq_sum = jnp.sum(diff * diff, axis=-1, keepdims=True)    # (TB, 1)
    dist = jnp.sqrt(sq_sum)                                  # only for the hinge

    # (1 - y) * d^2 + y * clamp(margin - d, 0)^2   (d^2 == sq_sum exactly).
    # Kept as the linear blend (not jnp.where) to preserve the module's exact
    # semantics for non-binary labels; it is (TB, 1)-sized so its cost is
    # negligible next to the (TB, D) element work.
    hinge = jnp.maximum(margin - dist, 0.0)
    per_row = (1.0 - label) * sq_sum + label * (hinge * hinge)   # (TB, 1)

    if mask_from_tile is None:
        # Every grid tile is fully in range (known statically): no masking.
        acc_ref[...] += per_row
    else:
        # Only tiles >= mask_from_tile can contain rows past the true batch
        # (the ragged last tile and any fully out-of-range tiles of the last
        # slice). Keep the iota/compare/select off the steady-state path.
        @pl.when(t < mask_from_tile)
        def _():
            acc_ref[...] += per_row

        @pl.when(t >= mask_from_tile)
        def _():
            row_ids = t * row_tile + jax.lax.broadcasted_iota(
                jnp.int32, per_row.shape, 0)
            # Select (not arithmetic masking): padded rows may hold garbage/NaN.
            acc_ref[...] += jnp.where(row_ids < batch, per_row, 0.0)

    @pl.when(j == pl.num_programs(1) - 1)
    def _():
        # One cross-sublane (XLU) reduction per slice, outside the hot loop.
        out_ref[...] = jnp.sum(acc_ref[...], axis=0, keepdims=True)[None]


def _choose_row_tile(B, D, feat_dtype):
    itemsize = jnp.dtype(feat_dtype).itemsize
    packing = max(8, 32 // itemsize)       # f32 -> 8, bf16 -> 16, int8/fp8 -> 32
    if B <= packing:
        return int(B)                      # one block == the full leading dim

    # VMEM bytes that scale per row of tile:
    #   2 feature inputs x 2 pipeline buffers x (D x itemsize)
    # + label block (lane-padded to 128 f32 lanes) x 2 buffers
    # + (TB, 1) f32 accumulator (lane-padded), single copy.
    per_row_bytes = 2 * 2 * D * itemsize + 2 * 128 * 4 + 128 * 4
    budget_bytes = 24 * 1024 * 1024        # headroom inside v7x's 64 MiB VMEM
    max_tb_budget = budget_bytes // per_row_bytes

    # Cap each feature block at ~4 MiB: well past the ~1 MiB HBM-roofline knee.
    max_tb_block = (4 * 1024 * 1024) // (D * itemsize)

    tb = max(packing, min(max_tb_budget, max_tb_block))
    tb = (tb // packing) * packing
    # A tile larger than the (rounded-up) batch is wasted padding.
    tb = min(tb, -(-B // packing) * packing)
    return int(tb)


def contrastive_loss(output1, output2, label, margin=2.0, row_tile=None):
    """output1, output2: (B, D); label: (B, 1). Returns a () float32 scalar."""
    B, D = output1.shape
    assert output2.shape == (B, D)
    assert label.shape == (B, 1)

    feat_dtype = output1.dtype
    itemsize = jnp.dtype(feat_dtype).itemsize
    packing = max(8, 32 // itemsize)
    tb = int(row_tile) if row_tile is not None else _choose_row_tile(
        B, D, feat_dtype)
    assert tb == B or tb % packing == 0, (tb, packing)

    # Label HBM traffic is tiny (B rows x 1); keep it f32 so its sublane
    # packing (8) never conflicts with the feature-tile rounding.
    label_f32 = label.astype(jnp.float32)

    total_tiles = -(-B // tb)
    # Leading 'parallel' axis: both TensorCores on v7x; sequential elsewhere.
    num_slices = 2 if total_tiles >= 2 else 1
    tiles_per_slice = -(-total_tiles // num_slices)
    num_grid_tiles = num_slices * tiles_per_slice

    first_masked_tile = total_tiles - 1 if (B % tb) != 0 else total_tiles
    mask_from_tile = (first_masked_tile
                      if first_masked_tile < num_grid_tiles else None)

    def row_index_map(c, j):
        # Clamp so any extra tiles of the last slice stay in bounds; their
        # rows are masked out inside the kernel.
        return (jnp.minimum(c * tiles_per_slice + j, total_tiles - 1), 0)

    kernel = functools.partial(
        _contrastive_loss_kernel,
        margin=float(margin), batch=int(B), row_tile=int(tb),
        tiles_per_slice=int(tiles_per_slice), mask_from_tile=mask_from_tile)

    cost = pl.CostEstimate(
        flops=B * (3 * D + 10),
        transcendentals=B,                                     # sqrt per row
        bytes_accessed=2 * B * D * itemsize + B * 4 + num_slices * 4)

    partial_sums = pl.pallas_call(
        kernel,
        out_shape=jax.ShapeDtypeStruct((num_slices, 1, 1), jnp.float32),
        grid_spec=pltpu.PrefetchScalarGridSpec(
            num_scalar_prefetch=0,
            grid=(num_slices, tiles_per_slice),
            in_specs=[
                pl.BlockSpec((tb, D), row_index_map),
                pl.BlockSpec((tb, D), row_index_map),
                pl.BlockSpec((tb, 1), row_index_map),
            ],
            out_specs=pl.BlockSpec((1, 1, 1), lambda c, j: (c, 0, 0)),
            scratch_shapes=[pltpu.VMEM((tb, 1), jnp.float32)],
        ),
        compiler_params=pltpu.CompilerParams(
            dimension_semantics=("parallel", "arbitrary"),
            vmem_limit_bytes=48 * 1024 * 1024,
        ),
        cost_estimate=cost,
    )(output1, output2, label_f32)

    return jnp.sum(partial_sums) / jnp.float32(B)


def _reference(output1, output2, label, margin=2.0):
    # Pure-JAX reference mirroring the PyTorch forward.
    o1 = output1.astype(jnp.float32)
    o2 = output2.astype(jnp.float32)
    lab = label.astype(jnp.float32)
    diff = o1 - o2 + _EPS
    dist = jnp.sqrt(jnp.sum(diff * diff, axis=-1, keepdims=True))
    loss = (1.0 - lab) * dist ** 2 + lab * jnp.maximum(margin - dist, 0.0) ** 2
    return jnp.mean(loss)


if __name__ == "__main__":
    key = jax.random.PRNGKey(0)
    keys = jax.random.split(key, 9)

    # Case 1: manual tile of 16 on B=40 -> two slices, grid (2, 2), one ragged
    # tile and one fully out-of-range (clamped + masked) tile.
    B1, D1 = 40, 96
    a1 = jax.random.normal(keys[0], (B1, D1), dtype=jnp.float32)
    b1 = jax.random.normal(keys[1], (B1, D1), dtype=jnp.float32)
    l1 = jax.random.bernoulli(keys[2], 0.5, (B1, 1)).astype(jnp.float32)
    loss1 = jax.block_until_ready(contrastive_loss(a1, b1, l1, margin=2.0,
                                                   row_tile=16))
    ref1 = _reference(a1, b1, l1, margin=2.0)
    assert jnp.allclose(loss1, ref1, rtol=1e-5, atol=1e-5), (loss1, ref1)

    # Case 2: default tile selection, single tile, no masking.
    B2, D2 = 64, 128
    a2 = jax.random.normal(keys[3], (B2, D2), dtype=jnp.float32)
    b2 = jax.random.normal(keys[4], (B2, D2), dtype=jnp.float32)
    l2 = jax.random.bernoulli(keys[5], 0.5, (B2, 1)).astype(jnp.float32)
    loss2 = jax.block_until_ready(contrastive_loss(a2, b2, l2, margin=2.0))
    ref2 = _reference(a2, b2, l2, margin=2.0)
    assert jnp.allclose(loss2, ref2, rtol=1e-5, atol=1e-5), (loss2, ref2)

    # Case 3: bf16 inputs (16-row sublane packing), ragged single block.
    B3, D3 = 200, 64
    a3 = jax.random.normal(keys[6], (B3, D3), dtype=jnp.bfloat16)
    b3 = jax.random.normal(keys[7], (B3, D3), dtype=jnp.bfloat16)
    l3 = jax.random.bernoulli(keys[8], 0.5, (B3, 1)).astype(jnp.float32)
    loss3 = jax.block_until_ready(contrastive_loss(a3, b3, l3, margin=2.0))
    ref3 = _reference(a3, b3, l3, margin=2.0)
    assert jnp.allclose(loss3, ref3, rtol=1e-5, atol=1e-5), (loss3, ref3)

    print("KERNEL_OK")
</pallas_src>

<mosaic_0001>
module attributes {stable_mosaic.version = 11 : i64} {
  func.func @_contrastive_loss_kernel(%arg0: i32, %arg1: i32, %arg2: memref<16x96xf32, #tpu.memory_space<vmem>>, %arg3: memref<16x96xf32, #tpu.memory_space<vmem>>, %arg4: memref<16x1xf32, #tpu.memory_space<vmem>>, %arg5: memref<1x1x1xf32, #tpu.memory_space<vmem>>, %arg6: memref<16x1xf32, #tpu.memory_space<vmem>>) attributes {dimension_semantics = [#tpu.dimension_semantics<parallel>, #tpu.dimension_semantics<arbitrary>], iteration_bounds = array<i64: 2, 2>, scalar_prefetch = 0 : i64, scratch_operands = 1 : i64, tpu.core_type = #tpu.core_type<tc>, window_params = [{transform_indices = @transform_0, window_bounds = array<i64: 16, 96>}, {transform_indices = @transform_1, window_bounds = array<i64: 16, 96>}, {transform_indices = @transform_2, window_bounds = array<i64: 16, 1>}, {transform_indices = @transform_3, window_bounds = array<i64: 1, 1, 1>}]} {
    %c2_i32 = arith.constant 2 : i32
    %0 = arith.muli %arg0, %c2_i32 : i32
    %1 = arith.addi %0, %arg1 : i32
    %c0_i32 = arith.constant 0 : i32
    %2 = arith.cmpi eq, %arg1, %c0_i32 : i32
    %3 = arith.extui %2 : i1 to i32
    %c0_i32_0 = arith.constant 0 : i32
    %4 = arith.cmpi ne, %3, %c0_i32_0 : i32
    scf.if %4 {
      %cst_15 = arith.constant 0.000000e+00 : f32
      %34 = vector.broadcast %cst_15 : f32 to vector<16x1xf32>
      %c0_16 = arith.constant 0 : index
      %c0_17 = arith.constant 0 : index
      %35 = vector.load %arg6[%c0_16, %c0_17] : memref<16x1xf32, #tpu.memory_space<vmem>>, vector<16x1xf32>
      tpu.vector_store %arg6[%c0_16, %c0_17], %34 {strides = array<i32>} : memref<16x1xf32, #tpu.memory_space<vmem>>, vector<16x1xf32>,
    } else {
    }
    %c0 = arith.constant 0 : index
    %c0_1 = arith.constant 0 : index
    %5 = vector.load %arg2[%c0, %c0_1] : memref<16x96xf32, #tpu.memory_space<vmem>>, vector<16x96xf32>
    %c0_2 = arith.constant 0 : index
    %c0_3 = arith.constant 0 : index
    %6 = vector.load %arg3[%c0_2, %c0_3] : memref<16x96xf32, #tpu.memory_space<vmem>>, vector<16x96xf32>
    %c0_4 = arith.constant 0 : index
    %c0_5 = arith.constant 0 : index
    %7 = vector.load %arg4[%c0_4, %c0_5] : memref<16x1xf32, #tpu.memory_space<vmem>>, vector<16x1xf32>
    %8 = arith.subf %5, %6 : vector<16x96xf32>
    %cst = arith.constant 9.99999997E-7 : f32
    %9 = vector.broadcast %cst : f32 to vector<16x96xf32>
    %10 = arith.addf %8, %9 : vector<16x96xf32>
    %11 = arith.mulf %10, %10 : vector<16x96xf32>
    %cst_6 = arith.constant dense<0.000000e+00> : vector<16xf32>
    %12 = vector.multi_reduction <add>, %11, %cst_6 [1] : vector<16x96xf32> to vector<16xf32>
    %13 = vector.shape_cast %12 : vector<16xf32> to vector<16x1xf32>
    %14 = math.sqrt %13 : vector<16x1xf32>
    %cst_7 = arith.constant 2.000000e+00 : f32
    %15 = vector.broadcast %cst_7 : f32 to vector<16x1xf32>
    %16 = arith.subf %15, %14 : vector<16x1xf32>
    %cst_8 = arith.constant 0.000000e+00 : f32
    %17 = vector.broadcast %cst_8 : f32 to vector<16x1xf32>
    %18 = arith.maximumf %16, %17 : vector<16x1xf32>
    %cst_9 = arith.constant 1.000000e+00 : f32
    %19 = vector.broadcast %cst_9 : f32 to vector<16x1xf32>
    %20 = arith.subf %19, %7 : vector<16x1xf32>
    %21 = arith.mulf %20, %13 : vector<16x1xf32>
    %22 = arith.mulf %18, %18 : vector<16x1xf32>
    %23 = arith.mulf %7, %22 : vector<16x1xf32>
    %24 = arith.addf %21, %23 : vector<16x1xf32>
    %c2_i32_10 = arith.constant 2 : i32
    %25 = arith.cmpi slt, %1, %c2_i32_10 : i32
    %26 = arith.extui %25 : i1 to i32
    %c0_i32_11 = arith.constant 0 : i32
    %27 = arith.cmpi ne, %26, %c0_i32_11 : i32
    scf.if %27 {
      %c0_15 = arith.constant 0 : index
      %c0_16 = arith.constant 0 : index
      %34 = vector.load %arg6[%c0_15, %c0_16] : memref<16x1xf32, #tpu.memory_space<vmem>>, vector<16x1xf32>
      %35 = arith.addf %34, %24 : vector<16x1xf32>
      %c0_17 = arith.constant 0 : index
      %c0_18 = arith.constant 0 : index
      %36 = vector.load %arg6[%c0_17, %c0_18] : memref<16x1xf32, #tpu.memory_space<vmem>>, vector<16x1xf32>
      tpu.vector_store %arg6[%c0_17, %c0_18], %35 {strides = array<i32>} : memref<16x1xf32, #tpu.memory_space<vmem>>, vector<16x1xf32>,
    } else {
    }
    %c2_i32_12 = arith.constant 2 : i32
    %28 = arith.cmpi sge, %1, %c2_i32_12 : i32
    %29 = arith.extui %28 : i1 to i32
    %c0_i32_13 = arith.constant 0 : i32
    %30 = arith.cmpi ne, %29, %c0_i32_13 : i32
    scf.if %30 {
      %c16_i32 = arith.constant 16 : i32
      %34 = arith.muli %1, %c16_i32 : i32
      %35 = tpu.iota {dimensions = array<i32: 0>} : vector<16x1xi32>
      %36 = vector.broadcast %34 : i32 to vector<16x1xi32>
      %37 = arith.addi %36, %35 : vector<16x1xi32>
      %c0_15 = arith.constant 0 : index
      %c0_16 = arith.constant 0 : index
      %38 = vector.load %arg6[%c0_15, %c0_16] : memref<16x1xf32, #tpu.memory_space<vmem>>, vector<16x1xf32>
      %c40_i32 = arith.constant 40 : i32
      %39 = vector.broadcast %c40_i32 : i32 to vector<16x1xi32>
      %40 = arith.cmpi slt, %37, %39 : vector<16x1xi32>
      %cst_17 = arith.constant 0.000000e+00 : f32
      %41 = vector.broadcast %cst_17 : f32 to vector<16x1xf32>
      %42 = arith.select %40, %24, %41 : vector<16x1xi1>, vector<16x1xf32>
      %43 = arith.addf %38, %42 : vector<16x1xf32>
      %c0_18 = arith.constant 0 : index
      %c0_19 = arith.constant 0 : index
      %44 = vector.load %arg6[%c0_18, %c0_19] : memref<16x1xf32, #tpu.memory_space<vmem>>, vector<16x1xf32>
      tpu.vector_store %arg6[%c0_18, %c0_19], %43 {strides = array<i32>} : memref<16x1xf32, #tpu.memory_space<vmem>>, vector<16x1xf32>,
    } else {
    }
    %c1_i32 = arith.constant 1 : i32
    %31 = arith.cmpi eq, %arg1, %c1_i32 : i32
    %32 = arith.extui %31 : i1 to i32
    %c0_i32_14 = arith.constant 0 : i32
    %33 = arith.cmpi ne, %32, %c0_i32_14 : i32
    scf.if %33 {
      %c0_15 = arith.constant 0 : index
      %c0_16 = arith.constant 0 : index
      %34 = vector.load %arg6[%c0_15, %c0_16] : memref<16x1xf32, #tpu.memory_space<vmem>>, vector<16x1xf32>
      %cst_17 = arith.constant dense<0.000000e+00> : vector<1xf32>
      %35 = vector.multi_reduction <add>, %34, %cst_17 [0] : vector<16x1xf32> to vector<1xf32>
      %36 = vector.shape_cast %35 : vector<1xf32> to vector<1x1xf32>
      %37 = vector.shape_cast %36 : vector<1x1xf32> to vector<1x1x1xf32>
      %c0_18 = arith.constant 0 : index
      %c0_19 = arith.constant 0 : index
      %c0_20 = arith.constant 0 : index
      %38 = vector.load %arg5[%c0_18, %c0_19, %c0_20] : memref<1x1x1xf32, #tpu.memory_space<vmem>>, vector<1x1x1xf32>
      tpu.vector_store %arg5[%c0_18, %c0_19, %c0_20], %37 {strides = array<i32>} : memref<1x1x1xf32, #tpu.memory_space<vmem>>, vector<1x1x1xf32>,
    } else {
    }
    return
  }
  func.func @transform_0(%arg0: i32, %arg1: i32) -> (i32, i32) {
    %c2_i32 = arith.constant 2 : i32
    %0 = arith.muli %arg0, %c2_i32 : i32
    %1 = arith.addi %0, %arg1 : i32
    %c2_i32_0 = arith.constant 2 : i32
    %2 = arith.minsi %1, %c2_i32_0 : i32
    %c0_i32 = arith.constant 0 : i32
    %c0_i32_1 = arith.constant 0 : i32
    return %2, %c0_i32 : i32, i32
  }
  func.func @transform_1(%arg0: i32, %arg1: i32) -> (i32, i32) {
    %c2_i32 = arith.constant 2 : i32
    %0 = arith.muli %arg0, %c2_i32 : i32
    %1 = arith.addi %0, %arg1 : i32
    %c2_i32_0 = arith.constant 2 : i32
    %2 = arith.minsi %1, %c2_i32_0 : i32
    %c0_i32 = arith.constant 0 : i32
    %c0_i32_1 = arith.constant 0 : i32
    return %2, %c0_i32 : i32, i32
  }
  func.func @transform_2(%arg0: i32, %arg1: i32) -> (i32, i32) {
    %c2_i32 = arith.constant 2 : i32
    %0 = arith.muli %arg0, %c2_i32 : i32
    %1 = arith.addi %0, %arg1 : i32
    %c2_i32_0 = arith.constant 2 : i32
    %2 = arith.minsi %1, %c2_i32_0 : i32
    %c0_i32 = arith.constant 0 : i32
    %c0_i32_1 = arith.constant 0 : i32
    return %2, %c0_i32 : i32, i32
  }
  func.func @transform_3(%arg0: i32, %arg1: i32) -> (i32, i32, i32) {
    %c0_i32 = arith.constant 0 : i32
    %c0_i32_0 = arith.constant 0 : i32
    %c0_i32_1 = arith.constant 0 : i32
    return %arg0, %c0_i32, %c0_i32_0 : i32, i32, i32
  }
}

</mosaic_0001>

<llo_original>
// kernel: tpu_custom_call.1
$region0: #{tpu_custom_call.1}
  #allocation0 [shape = 'u32[]', space=smem, size = 0x4, offset = 0x4, fixed_abs, tag = 'smem constant byte address 0x4 - core index']
  #allocation1 [shape = 'u32[144,128]{1,0:T(1,128)}', space=vmem, size = 0x12000, scoped, tag = 'internal scratch']
  #allocation2 [shape = 'f32[16,1]{1,0:T(8,128)}', space=vmem, size = 0x2000, scoped, tag = 'scratch operand']
  %s0 = inlined_call_operand.vmem [shape: f32[40,96], index: 0, kind: input, shape index: {}]
  %s1 = inlined_call_operand.hbm [shape: f32[40,96], index: 1, kind: input, shape index: {}]
  %s2 = inlined_call_operand.vmem [shape: f32[40,1], index: 2, kind: input, shape index: {}]
  %s3 = inlined_call_operand.vmem [shape: f32[2,1,1], index: 3, kind: output, shape index: {}]
  %s4 = sld [smem:[#allocation0]]
  $region65: #{tpu_custom_call.1} parent=0
    _
  %s6 = ssub.s32 1, %s4
  %s7 = scalar_select 0, %s6, %s4
  $region1: #{tpu_custom_call.1} parent=0
    #allocation3 [shape = 'u8[16384]{0}', space=vmem, size = 0x4000, scoped, tag = 'input window, operand 1']
    #allocation4 [shape = 's32[2]{0}', space=sflag, size = 0x8, scoped, tag = 'scoped memory for tpu_custom_call.1']
    %8 = vsyncpa [#allocation4], 0
    %s9 = scalar_lea.sflag [#allocation4], 1
    %10 = vsyncpa %s9, 0
    loop: start=0, step=1, limit=6
    $region2: #{tpu_custom_call.1} parent=1 // loop_pre_header
      _
    $region3: #{tpu_custom_call.1} parent=1 // loop_header
      %s12 = sphi 0, %s16
      %p13 = scmp.ge.s32.totalorder %s12, 6
      %s19 = sphi 0, %s31
      %s20 = sphi 0, %s27
      %s21 = sphi 0, %s19
      %s22 = sphi 0, %s20
      %s23 = sphi 0, %s21
      %s24 = sphi 0, %s22
      %s42 = sphi 0, %s44
      %s45 = sphi 0, %s42
      %s46 = sphi 0, %s45
      %s62 = sphi 0, %s46
      %s76 = sphi 0, %s78
      %s79 = sphi 0, %s76
      %s80 = sphi 0, %s79
      %s96 = sphi 0, %s80
      %s110 = sphi 0, %s112
      %s113 = sphi 0, %s110
      %s114 = sphi 0, %s113
      %s130 = sphi 0, %s114
      %s136 = sphi 0, %s138
      %s139 = sphi 0, %s136
      %s140 = sphi 0, %s139
      %s156 = sphi 0, %s140
    $region4: #{tpu_custom_call.1} parent=1 // loop_header_branch
      %15 = sbr.rel (%p13) target = $region8
    $region5: #{tpu_custom_call.1} parent=1 // loop_body
      %s17 = ssub.s32 %s12, 1
      %s18 = ssub.s32 %s12, 2
      %s25 = sadd.s32 1, %s20
      %p26 = scmp.ge.s32.totalorder %s25, 2
      %s27 = scalar_select %p26, 0, %s25
      %s28 = sadd.s32 1, %s19
      %s29 = scalar_select %p26, %s28, %s19
      %p30 = scmp.ge.s32.totalorder %s29, 2
      %s31 = scalar_select %p30, 0, %s29
      %s32 = smul.u32 %s19, 2
      %s33 = sadd.s32 %s32, %s20
      %p34 = scmp.lt.s32.totalorder %s33, 2
      %s35 = scalar_select %p34, %s33, 2
      %s36 = smul.u32 %s31, 2
      %s37 = sadd.s32 %s36, %s27
      %p38 = scmp.lt.s32.totalorder %s37, 2
      %s39 = scalar_select %p38, %s37, 2
      %s40 = ssub.s32 %s35, %s39
      %p41 = scmp.eq.s32.totalorder %s40, 0
      %s43 = sadd.s32 %s42, 1
      %s44 = scalar_select %p41, %s42, %s43
      %p47 = pneg %p41
      %p48 = scmp.eq.s32.totalorder %s12, 3
      %p49 = por %p47, %p48
      %p50 = scmp.ne.s32.totalorder %s42, %s45
      %p51 = scmp.eq.s32.totalorder %s12, 0
      %p52 = por %p50, %p51
      %p53 = scmp.ne.s32.totalorder %s42, %s45
      %p54 = scmp.eq.s32.totalorder %s17, 3
      %p55 = por %p53, %p54
      %p56 = scmp.ne.s32.totalorder %s45, %s46
      %p57 = scmp.eq.s32.totalorder %s17, 0
      %p58 = por %p56, %p57
      %p59 = scmp.ne.s32.totalorder %s45, %s46
      %p60 = scmp.eq.s32.totalorder %s18, 3
      %p61 = por %p59, %p60
      %p63 = scmp.ne.s32.totalorder %s46, %s62
      %p64 = scmp.eq.s32.totalorder %s18, 0
      %p65 = por %p63, %p64
      %s66 = smul.u32 %s19, 2
      %s67 = sadd.s32 %s66, %s20
      %p68 = scmp.lt.s32.totalorder %s67, 2
      %s69 = scalar_select %p68, %s67, 2
      %s70 = smul.u32 %s31, 2
      %s71 = sadd.s32 %s70, %s27
      %p72 = scmp.lt.s32.totalorder %s71, 2
      %s73 = scalar_select %p72, %s71, 2
      %s74 = ssub.s32 %s69, %s73
      %p75 = scmp.eq.s32.totalorder %s74, 0
      %s77 = sadd.s32 %s76, 1
      %s78 = scalar_select %p75, %s76, %s77
      %p81 = pneg %p75
      %p82 = scmp.eq.s32.totalorder %s12, 3
      %p83 = por %p81, %p82
      %p84 = scmp.ne.s32.totalorder %s76, %s79
      %p85 = scmp.eq.s32.totalorder %s12, 0
      %p86 = por %p84, %p85
      %p87 = scmp.ne.s32.totalorder %s76, %s79
      %p88 = scmp.eq.s32.totalorder %s17, 3
      %p89 = por %p87, %p88
      %p90 = scmp.ne.s32.totalorder %s79, %s80
      %p91 = scmp.eq.s32.totalorder %s17, 0
      %p92 = por %p90, %p91
      %p93 = scmp.ne.s32.totalorder %s79, %s80
      %p94 = scmp.eq.s32.totalorder %s18, 3
      %p95 = por %p93, %p94
      %p97 = scmp.ne.s32.totalorder %s80, %s96
      %p98 = scmp.eq.s32.totalorder %s18, 0
      %p99 = por %p97, %p98
      %s100 = smul.u32 %s19, 2
      %s101 = sadd.s32 %s100, %s20
      %p102 = scmp.lt.s32.totalorder %s101, 2
      %s103 = scalar_select %p102, %s101, 2
      %s104 = smul.u32 %s31, 2
      %s105 = sadd.s32 %s104, %s27
      %p106 = scmp.lt.s32.totalorder %s105, 2
      %s107 = scalar_select %p106, %s105, 2
      %s108 = ssub.s32 %s103, %s107
      %p109 = scmp.eq.s32.totalorder %s108, 0
      %s111 = sadd.s32 %s110, 1
      %s112 = scalar_select %p109, %s110, %s111
      %p115 = pneg %p109
      %p116 = scmp.eq.s32.totalorder %s12, 3
      %p117 = por %p115, %p116
      %p118 = scmp.ne.s32.totalorder %s110, %s113
      %p119 = scmp.eq.s32.totalorder %s12, 0
      %p120 = por %p118, %p119
      %p121 = scmp.ne.s32.totalorder %s110, %s113
      %p122 = scmp.eq.s32.totalorder %s17, 3
      %p123 = por %p121, %p122
      %p124 = scmp.ne.s32.totalorder %s113, %s114
      %p125 = scmp.eq.s32.totalorder %s17, 0
      %p126 = por %p124, %p125
      %p127 = scmp.ne.s32.totalorder %s113, %s114
      %p128 = scmp.eq.s32.totalorder %s18, 3
      %p129 = por %p127, %p128
      %p131 = scmp.ne.s32.totalorder %s114, %s130
      %p132 = scmp.eq.s32.totalorder %s18, 0
      %p133 = por %p131, %p132
      %s134 = ssub.s32 %s19, %s31
      %p135 = scmp.eq.s32.totalorder %s134, 0
      %s137 = sadd.s32 %s136, 1
      %s138 = scalar_select %p135, %s136, %s137
      %p141 = pneg %p135
      %p142 = scmp.eq.s32.totalorder %s12, 3
      %p143 = por %p141, %p142
      %p144 = scmp.ne.s32.totalorder %s136, %s139
      %p145 = scmp.eq.s32.totalorder %s12, 0
      %p146 = por %p144, %p145
      %p147 = scmp.ne.s32.totalorder %s136, %s139
      %p148 = scmp.eq.s32.totalorder %s17, 3
      %p149 = por %p147, %p148
      %p150 = scmp.ne.s32.totalorder %s139, %s140
      %p151 = scmp.eq.s32.totalorder %s17, 0
      %p152 = por %p150, %p151
      %p153 = scmp.ne.s32.totalorder %s139, %s140
      %p154 = scmp.eq.s32.totalorder %s18, 3
      %p155 = por %p153, %p154
      %p157 = scmp.ne.s32.totalorder %s140, %s156
      %p158 = scmp.eq.s32.totalorder %s18, 0
      %p159 = por %p157, %p158
      %p160 = scmp.le.s32.totalorder 1, %s12
      %p161 = scmp.lt.s32.totalorder %s12, 5
      %p162 = pnand %p160, %p161
      %p163 = pneg %p162
      // Predicated region
      $region9: #{tpu_custom_call.1} parent=5 // pred_check
        _
      $region10: #{tpu_custom_call.1} parent=5 // pred_check_branch
        %165 = sbr.rel (%p162) target = $region12
      $region11: #{tpu_custom_call.1} parent=5 // pred_region
        %s166 = ssub.s32 %s12, 1
      $region12: #{tpu_custom_call.1} parent=5 // pred_fallthru
        _
      %p167 = scmp.lt.s32.totalorder %s12, 4
      // Predicated region
      $region13: #{tpu_custom_call.1} parent=5 // pred_check
        %p168 = pneg %p167
      $region14: #{tpu_custom_call.1} parent=5 // pred_check_branch
        %170 = sbr.rel (%p168) target = $region16
      $region15: #{tpu_custom_call.1} parent=5 // pred_region
        // Predicated region
        $region17: #{tpu_custom_call.1} parent=15 // pred_check
          %p171 = pneg %p52
        $region18: #{tpu_custom_call.1} parent=15 // pred_check_branch
          %173 = sbr.rel (%p171) target = $region20
        $region19: #{tpu_custom_call.1} parent=15 // pred_region
          %s174 = smul.u32 %s19, 2
          %s175 = sadd.s32 %s174, %s20
          %p176 = scmp.lt.s32.totalorder %s175, 2
          %s177 = scalar_select %p176, %s175, 2
          %s178 = smul.u32 2, %s177
          %s179 = ssub.s32 5, %s178
          %p180 = scmp.lt.s32.totalorder %s179, 2
          %s181 = scalar_select %p180, %s179, 2
          %s182 = smul.u32 128, %s181
          %p183 = scmp.lt.s32.totalorder %s178, 4
          %s184 = scalar_select %p183, %s178, 4
          %s185 = smul.addr %s184, 8
          %s186 = scalar_lea.vmem %s0, %s185
          %s187 = smul.u32 %s19, 2
          %s188 = sadd.s32 %s187, %s20
          %p189 = scmp.lt.s32.totalorder %s188, 2
          %s190 = scalar_select %p189, %s188, 2
          %s191 = smul.u32 2, %s190
          %s192 = ssub.s32 5, %s191
          %p193 = scmp.lt.s32.totalorder %s192, 2
          %s194 = scalar_select %p193, %s192, 2
          %s195 = smul.u32 128, %s194
        $region20: #{tpu_custom_call.1} parent=15 // pred_fallthru
          _
        // Predicated region
        $region21: #{tpu_custom_call.1} parent=15 // pred_check
          %p196 = pneg %p86
        $region22: #{tpu_custom_call.1} parent=15 // pred_check_branch
          %198 = sbr.rel (%p196) target = $region24
        $region23: #{tpu_custom_call.1} parent=15 // pred_region
          %s199 = sand.u32 %s76, 1
          %s200 = scalar_lea.sflag [#allocation4], %s199
          %s201 = sand.u32 %s76, 1
          %s202 = smul.addr %s201, 16
          %s203 = scalar_lea.vmem [#allocation3], %s202
          %s204 = smul.u32 %s19, 2
          %s205 = sadd.s32 %s204, %s20
          %p206 = scmp.lt.s32.totalorder %s205, 2
          %s207 = scalar_select %p206, %s205, 2
          %s208 = smul.u32 2, %s207
          %s209 = ssub.s32 5, %s208
          %p210 = scmp.lt.s32.totalorder %s209, 2
          %s211 = scalar_select %p210, %s209, 2
          %s212 = smul.u32 128, %s211
          %s214 = ssub.s32 256, %s212
          %215 = vsyncadd %s200, %s214
          %p216 = scmp.ne.s32.totalorder 0, %s212
          %s217 = smul.addr %s208, 128
          %s218 = scalar_lea.hbm %s1, %s217
          %s219 = smul.u32 8, %s211
          %s220 = sshll.u32 %s203, 4
          %s221 = int_to_ptr.vmem [resolvable:$true] %s220
          %s222 = sshll.u32 %s219, 4
          %226 = dma.hbm_to_vmem [thread:$0]  (%p216), %s218, %s222, %s221, %s200, 128, 128, 8
        $region24: #{tpu_custom_call.1} parent=15 // pred_fallthru
          _
        // Predicated region
        $region25: #{tpu_custom_call.1} parent=15 // pred_check
          %p227 = pneg %p120
        $region26: #{tpu_custom_call.1} parent=15 // pred_check_branch
          %229 = sbr.rel (%p227) target = $region28
        $region27: #{tpu_custom_call.1} parent=15 // pred_region
          %s230 = smul.u32 %s19, 2
          %s231 = sadd.s32 %s230, %s20
          %p232 = scmp.lt.s32.totalorder %s231, 2
          %s233 = scalar_select %p232, %s231, 2
          %s234 = smul.u32 2, %s233
          %s235 = ssub.s32 5, %s234
          %p236 = scmp.lt.s32.totalorder %s235, 2
          %s237 = scalar_select %p236, %s235, 2
          %s238 = smul.u32 128, %s237
          %p239 = scmp.lt.s32.totalorder %s234, 4
          %s240 = scalar_select %p239, %s234, 4
          %s241 = smul.addr %s240, 8
          %s242 = scalar_lea.vmem %s2, %s241
          %s243 = smul.u32 %s19, 2
          %s244 = sadd.s32 %s243, %s20
          %p245 = scmp.lt.s32.totalorder %s244, 2
          %s246 = scalar_select %p245, %s244, 2
          %s247 = smul.u32 2, %s246
          %s248 = ssub.s32 5, %s247
          %p249 = scmp.lt.s32.totalorder %s248, 2
          %s250 = scalar_select %p249, %s248, 2
          %s251 = smul.u32 128, %s250
        $region28: #{tpu_custom_call.1} parent=15 // pred_fallthru
          _
      $region16: #{tpu_custom_call.1} parent=5 // pred_fallthru
        _
      %p252 = scmp.le.s32.totalorder 1, %s12
      %p253 = scmp.lt.s32.totalorder %s12, 5
      %p254 = pnand %p252, %p253
      %p255 = pneg %p254
      // Predicated region
      $region29: #{tpu_custom_call.1} parent=5 // pred_check
        _
      $region30: #{tpu_custom_call.1} parent=5 // pred_check_branch
        %257 = sbr.rel (%p254) target = $region32
      $region31: #{tpu_custom_call.1} parent=5 // pred_region
        %s258 = ssub.s32 %s12, 1
        %s259 = sand.u32 %s79, 1
        %s260 = scalar_lea.sflag [#allocation4], %s259
        %s261 = sand.u32 %s79, 1
        %s262 = smul.addr %s261, 16
        %s263 = scalar_lea.vmem [#allocation3], %s262
        // Predicated region
        $region33: #{tpu_custom_call.1} parent=31 // pred_check
          %p264 = pneg %p92
        $region34: #{tpu_custom_call.1} parent=31 // pred_check_branch
          %266 = sbr.rel (%p264) target = $region36
        $region35: #{tpu_custom_call.1} parent=31 // pred_region
          %267 = dma.done %s260, 256
        $region36: #{tpu_custom_call.1} parent=31 // pred_fallthru
          _
        %s268 = smul.u32 %s21, 2
        %s269 = sadd.s32 %s268, %s22
        %p270 = scmp.lt.s32.totalorder %s269, 2
        %s271 = scalar_select %p270, %s269, 2
        %s272 = smul.u32 2, %s271
        %s273 = ssub.s32 5, %s272
        %p274 = scmp.lt.s32.totalorder %s273, 2
        %s275 = scalar_select %p274, %s273, 2
        %s276 = smul.u32 128, %s275
        %p277 = scmp.lt.s32.totalorder %s272, 4
        %s278 = scalar_select %p277, %s272, 4
        %s279 = smul.addr %s278, 8
        %s280 = scalar_lea.vmem %s0, %s279
        %p281 = pneg %p58
        %p282 = pneg %p55
        %s283 = sand.u32 %s79, 1
        %s284 = scalar_lea.sflag [#allocation4], %s283
        %s285 = sand.u32 %s79, 1
        %s286 = smul.addr %s285, 16
        %s287 = scalar_lea.vmem [#allocation3], %s286
        %p288 = pneg %p92
        %p289 = pneg %p89
        %s290 = smul.u32 %s21, 2
        %s291 = sadd.s32 %s290, %s22
        %p292 = scmp.lt.s32.totalorder %s291, 2
        %s293 = scalar_select %p292, %s291, 2
        %s294 = smul.u32 2, %s293
        %s295 = ssub.s32 5, %s294
        %p296 = scmp.lt.s32.totalorder %s295, 2
        %s297 = scalar_select %p296, %s295, 2
        %s298 = smul.u32 128, %s297
        %p299 = scmp.lt.s32.totalorder %s294, 4
        %s300 = scalar_select %p299, %s294, 4
        %s301 = smul.addr %s300, 8
        %s302 = scalar_lea.vmem %s2, %s301
        %p303 = pneg %p126
        %p304 = pneg %p123
        %p305 = pneg %p152
        %p306 = pneg %p149
        %p307 = scmp.lt.s32.totalorder %s21, 1
        %s308 = scalar_select %p307, %s21, 1
        %s309 = scalar_lea.vmem %s3, %s308
        %s310 = smul.u32 %s21, 2
        %s311 = sadd.s32 %s310, %s22
        %p312 = scmp.lt.s32.totalorder %s311, 2
        %s313 = scalar_select %p312, %s311, 2
        %s314 = smul.u32 2, %s313
        %s315 = ssub.s32 5, %s314
        %p316 = scmp.lt.s32.totalorder %s315, 2
        %s317 = scalar_select %p316, %s315, 2
        %s318 = smul.u32 128, %s317
        %p319 = scmp.lt.s32.totalorder %s314, 4
        %s320 = scalar_select %p319, %s314, 4
        %s321 = smul.addr %s320, 8
        %s322 = scalar_lea.vmem %s0, %s321
        %s323 = smul.u32 %s21, 2
        %s324 = sadd.s32 %s323, %s22
        %p325 = scmp.lt.s32.totalorder %s324, 2
        %s326 = scalar_select %p325, %s324, 2
        %s327 = smul.u32 2, %s326
        %s328 = ssub.s32 5, %s327
        %p329 = scmp.lt.s32.totalorder %s328, 2
        %s330 = scalar_select %p329, %s328, 2
        %s331 = smul.u32 128, %s330
        %s332 = smul.u32 %s21, 2
        %s333 = sadd.s32 %s332, %s22
        %p334 = scmp.lt.s32.totalorder %s333, 2
        %s335 = scalar_select %p334, %s333, 2
        %s336 = smul.u32 2, %s335
        %s337 = ssub.s32 5, %s336
        %p338 = scmp.lt.s32.totalorder %s337, 2
        %s339 = scalar_select %p338, %s337, 2
        %s340 = smul.u32 128, %s339
        %s341 = smul.u32 %s21, 2
        %s342 = sadd.s32 %s341, %s22
        %p343 = scmp.lt.s32.totalorder %s342, 2
        %s344 = scalar_select %p343, %s342, 2
        %s345 = smul.u32 2, %s344
        %s346 = ssub.s32 5, %s345
        %p347 = scmp.lt.s32.totalorder %s346, 2
        %s348 = scalar_select %p347, %s346, 2
        %s349 = smul.u32 128, %s348
        %p350 = scmp.lt.s32.totalorder %s345, 4
        %s351 = scalar_select %p350, %s345, 4
        %s352 = smul.addr %s351, 8
        %s353 = scalar_lea.vmem %s2, %s352
        %s354 = smul.u32 %s21, 2
        %s355 = sadd.s32 %s354, %s22
        %p356 = scmp.lt.s32.totalorder %s355, 2
        %s357 = scalar_select %p356, %s355, 2
        %s358 = smul.u32 2, %s357
        %s359 = ssub.s32 5, %s358
        %p360 = scmp.lt.s32.totalorder %s359, 2
        %s361 = scalar_select %p360, %s359, 2
        %s362 = smul.u32 128, %s361
        %p363 = scmp.lt.s32.totalorder %s21, 1
        %s364 = scalar_select %p363, %s21, 1
        %s365 = scalar_lea.vmem %s3, %s364
        %s366 = smul.u32 %s21, 2
        %s367 = sadd.s32 %s366, %s22
        %p368 = scmp.eq.s32.totalorder %s22, 0
        // Predicated region
        $region37: #{tpu_custom_call.1} parent=31 // pred_check
          %p369 = pneg %p368
        $region38: #{tpu_custom_call.1} parent=31 // pred_check_branch
          %371 = sbr.rel (%p369) target = $region40
        $region39: #{tpu_custom_call.1} parent=31 // pred_region
          %vm372 = vcmask 7168
          %373 = vst.msk [vmem:[#allocation2] sm:$0xff] %vm372, 0.0
          %374 = vst.msk [vmem:[#allocation2 + $0x8] sm:$0xff] %vm372, 0.0
        $region40: #{tpu_custom_call.1} parent=31 // pred_fallthru
          _
        %v375 = vld [vmem:[%s322] sm:$0xff]
        %v376 = vld [vmem:[%s322 + $0x8] sm:$0xff]
        %v377 = vld [vmem:[%s263] sm:$0xff]
        %v378 = vld [vmem:[%s263 + $0x8] sm:$0xff]
        %v379 = vld [vmem:[%s353] sm:$0xff]
        %v380 = vld [vmem:[%s353 + $0x8] sm:$0xff]
        %v381 = vsub.f32 %v375, %v377
        %v382 = vsub.f32 %v376, %v378
        %v383 = vadd.f32 %v381, 1e-06
        %v384 = vadd.f32 %v382, 1e-06
        %v385 = vmul.f32 %v383, %v383
        %v386 = vmul.f32 %v384, %v384
        %vm387 = vcmask 785408
        %v388 = vsel %vm387, %v385, 0.0
        %389 = vadd.xlane.f32.xlu0 %v388
        %v390 = vpop.xlane.xlu0 %389
        %v391 = vsel %vm387, %v386, 0.0
        %392 = vadd.xlane.f32.xlu0 %v391
        %v393 = vpop.xlane.xlu0 %392
        %v394 = vrsqrt.pop %v390
        %v395 = vmul.f32 %v390, %v394
        %vm396 = vcmp.eq.f32.partialorder %v390, inf
        %v397 = vsel %vm396, %v390, %v395
        %vm398 = vcmp.eq.f32.partialorder %v390, 0.0
        %v399 = vand.u32 %v390, 2147483648
        %v400 = vsel %vm398, %v399, %v397
        %v401 = vrsqrt.pop %v393
        %v402 = vmul.f32 %v393, %v401
        %vm403 = vcmp.eq.f32.partialorder %v393, inf
        %v404 = vsel %vm403, %v393, %v402
        %vm405 = vcmp.eq.f32.partialorder %v393, 0.0
        %v406 = vand.u32 %v393, 2147483648
        %v407 = vsel %vm405, %v406, %v404
        %v408 = vsub.f32 2.0, %v400
        %v409 = vsub.f32 2.0, %v407
        %v410 = vmax.f32 %v408, 0.0
        %v411 = vmax.f32 %v409, 0.0
        %v412 = vsub.f32 1.0, %v379
        %v413 = vsub.f32 1.0, %v380
        %v414 = vmul.f32 %v412, %v390
        %v415 = vmul.f32 %v413, %v393
        %v416 = vmul.f32 %v410, %v410
        %v417 = vmul.f32 %v411, %v411
        %v418 = vmul.f32 %v379, %v416
        %v419 = vmul.f32 %v380, %v417
        %v420 = vadd.f32 %v414, %v418
        %v421 = vadd.f32 %v415, %v419
        %p422 = scmp.lt.s32.totalorder %s367, 2
        // Predicated region
        $region41: #{tpu_custom_call.1} parent=31 // pred_check
          %p423 = pneg %p422
        $region42: #{tpu_custom_call.1} parent=31 // pred_check_branch
          %425 = sbr.rel (%p423) target = $region44
        $region43: #{tpu_custom_call.1} parent=31 // pred_region
          %v426 = vld [vmem:[#allocation2] sm:$0xff]
          %v427 = vld [vmem:[#allocation2 + $0x8] sm:$0xff]
          %v428 = vadd.f32 %v426, %v420
          %v429 = vadd.f32 %v427, %v421
          %vm430 = vcmask 7168
          %431 = vst.msk [vmem:[#allocation2] sm:$0xff] %vm430, %v428
          %432 = vst.msk [vmem:[#allocation2 + $0x8] sm:$0xff] %vm430, %v429
        $region44: #{tpu_custom_call.1} parent=31 // pred_fallthru
          _
        %p433 = scmp.ge.s32.totalorder %s367, 2
        // Predicated region
        $region45: #{tpu_custom_call.1} parent=31 // pred_check
          %p434 = pneg %p433
        $region46: #{tpu_custom_call.1} parent=31 // pred_check_branch
          %436 = sbr.rel (%p434) target = $region48
        $region47: #{tpu_custom_call.1} parent=31 // pred_region
          %s437 = smul.u32 %s367, 16
          %v438 = vlaneseq
          %v439 = vshrl.u32 %v438, 7
          %v440 = vadd.s32 %v439, 8
          %v441 = vstv %s437
          %v442 = vadd.s32 %v441, %v439
          %v443 = vadd.s32 %v441, %v440
          %v444 = vld [vmem:[#allocation2] sm:$0xff]
          %v445 = vld [vmem:[#allocation2 + $0x8] sm:$0xff]
          %vm446 = vcmp.lt.s32.totalorder %v442, 40
          %vm447 = vcmp.lt.s32.totalorder %v443, 40
          %v448 = vsel %vm446, %v420, 0.0
          %v449 = vsel %vm447, %v421, 0.0
          %v450 = vadd.f32 %v444, %v448
          %v451 = vadd.f32 %v445, %v449
          %vm452 = vcmask 7168
          %453 = vst.msk [vmem:[#allocation2] sm:$0xff] %vm452, %v450
          %454 = vst.msk [vmem:[#allocation2 + $0x8] sm:$0xff] %vm452, %v451
        $region48: #{tpu_custom_call.1} parent=31 // pred_fallthru
          _
        %p455 = scmp.eq.s32.totalorder %s22, 1
        // Predicated region
        $region49: #{tpu_custom_call.1} parent=31 // pred_check
          %p456 = pneg %p455
        $region50: #{tpu_custom_call.1} parent=31 // pred_check_branch
          %458 = sbr.rel (%p456) target = $region52
        $region51: #{tpu_custom_call.1} parent=31 // pred_region
          %v459 = vld [vmem:[#allocation2] sm:$0xff]
          %v460 = vld [vmem:[#allocation2 + $0x8] sm:$0xff]
          %vm461 = vcmask 7168
          %v462 = vsel %vm461, %v459, 0.0
          %v463 = vsel %vm461, %v460, 0.0
          %v464 = vadd.f32 %v462, %v463
          %v465 = vrot.slane %v464, 4
          %v466 = vadd.f32 %v464, %v465
          %v467 = vrot.slane %v466, 2
          %v468 = vadd.f32 %v466, %v467
          %v469 = vrot.slane %v468, 1
          %v470 = vadd.f32 %v468, %v469
          %vm471 = vcmask 0
          %472 = vst.msk [vmem:[%s365] sm:$0x1] %vm471, %v470
        $region52: #{tpu_custom_call.1} parent=31 // pred_fallthru
          _
        %p473 = scmp.lt.s32.totalorder %s21, 1
        %s474 = scalar_select %p473, %s21, 1
        %s475 = scalar_lea.vmem %s3, %s474
        // Predicated region
        $region53: #{tpu_custom_call.1} parent=31 // pred_check
          %p476 = pneg %p149
        $region54: #{tpu_custom_call.1} parent=31 // pred_check_branch
          %478 = sbr.rel (%p476) target = $region56
        $region55: #{tpu_custom_call.1} parent=31 // pred_region
          _
        $region56: #{tpu_custom_call.1} parent=31 // pred_fallthru
          _
      $region32: #{tpu_custom_call.1} parent=5 // pred_fallthru
        _
      %p479 = scmp.le.s32.totalorder 2, %s12
      // Predicated region
      $region57: #{tpu_custom_call.1} parent=5 // pred_check
        %p480 = pneg %p479
      $region58: #{tpu_custom_call.1} parent=5 // pred_check_branch
        %482 = sbr.rel (%p480) target = $region60
      $region59: #{tpu_custom_call.1} parent=5 // pred_region
        %s483 = ssub.s32 %s12, 2
        // Predicated region
        $region61: #{tpu_custom_call.1} parent=59 // pred_check
          %p484 = pneg %p155
        $region62: #{tpu_custom_call.1} parent=59 // pred_check_branch
          %486 = sbr.rel (%p484) target = $region64
        $region63: #{tpu_custom_call.1} parent=59 // pred_region
          %p487 = scmp.lt.s32.totalorder %s23, 1
          %s488 = scalar_select %p487, %s23, 1
          %s489 = scalar_lea.vmem %s3, %s488
        $region64: #{tpu_custom_call.1} parent=59 // pred_fallthru
          _
      $region60: #{tpu_custom_call.1} parent=5 // pred_fallthru
        _
    $region6: #{tpu_custom_call.1} parent=1 // loop_footer
      %s16 = sadd.s32 1, %s12
    $region7: #{tpu_custom_call.1} parent=1 // loop_footer_branch
      %11 = sbr.rel target = $region3
    $region8: #{tpu_custom_call.1} parent=1 // loop_exit
      _
    %490 = vsyncpa [#allocation4], 1
    %s491 = scalar_lea.sflag [#allocation4], 1
    %492 = vsyncpa %s491, 1

</llo_original>
